<compile_context>
chip_gen: v5e
topology: v5e:2x2
jax: 0.10.0
libtpu: 0.0.40
codegen_flags: <defaults>
</compile_context>

<pallas_src>
import jax
import jax.numpy as jnp
from jax.experimental import pallas as pl
from jax.experimental.pallas import tpu as pltpu


# ----------------------------------------------------------------------------
# Kernels
# ----------------------------------------------------------------------------
def _attention_critic_kernel(obs_ref, act_ref,
                             we_ref, be_ref, wad_ref, bad_ref,
                             w1_ref, b1_ref,
                             w2x_ref, w2a_ref, b2_ref,
                             wv_ref, bv_ref,
                             v_ref, att_ref):
    obs = obs_ref[...]
    act = act_ref[...]

    # e = tanh(lineare(obs))
    e = jnp.tanh(
        jnp.dot(obs, we_ref[...], preferred_element_type=jnp.float32) + be_ref[...]
    )

    # Attention[:, i] = softmax(head_i(e))[:, 1] == sigmoid(a1_i - a0_i),
    # computed with the fused difference weights (one matmul, one exp).
    logits = (jnp.dot(e, wad_ref[...], preferred_element_type=jnp.float32)
              + bad_ref[...])
    attention = 1.0 / (1.0 + jnp.exp(-logits))
    att_ref[...] = attention.T                      # (obs_dim, TILE_B) lane-dense store

    state_attention = obs * attention               # torch.mul(obs, Attention)

    # x = relu(linear1(state_attention))
    x = jnp.maximum(
        jnp.dot(state_attention, w1_ref[...], preferred_element_type=jnp.float32)
        + b1_ref[...],
        0.0,
    )

    # x = relu(linear2(cat((x, act), 1)))  -- concat folded into two matmuls
    x = jnp.maximum(
        jnp.dot(x, w2x_ref[...], preferred_element_type=jnp.float32)
        + jnp.dot(act, w2a_ref[...], preferred_element_type=jnp.float32)
        + b2_ref[...],
        0.0,
    )

    # V: reduce in the transposed (feature-on-sublane, batch-on-lane) layout so
    # the (1, TILE_B) output is a dense full-lane store instead of masked vst.
    xt = x.T                                        # (h1, TILE_B)
    v_ref[...] = jnp.sum(xt * wv_ref[...], axis=0, keepdims=True) + bv_ref[...]


def _critic_kernel(obs_ref, act_ref,
                   w1_ref, b1_ref,
                   w2x_ref, w2a_ref, b2_ref,
                   wv_ref, bv_ref,
                   v_ref):
    # with_attention=False path: state_attention = obs, Attention = None
    obs = obs_ref[...]
    act = act_ref[...]
    x = jnp.maximum(
        jnp.dot(obs, w1_ref[...], preferred_element_type=jnp.float32) + b1_ref[...],
        0.0,
    )
    x = jnp.maximum(
        jnp.dot(x, w2x_ref[...], preferred_element_type=jnp.float32)
        + jnp.dot(act, w2a_ref[...], preferred_element_type=jnp.float32)
        + b2_ref[...],
        0.0,
    )
    xt = x.T
    v_ref[...] = jnp.sum(xt * wv_ref[...], axis=0, keepdims=True) + bv_ref[...]


# ----------------------------------------------------------------------------
# Parameter construction (deterministic, PyTorch-style uniform(-1/sqrt(fan_in)))
# ----------------------------------------------------------------------------
def init_params(key, obs_dim, act_dim, hidden_sizes, e_outputs):
    h0, h1 = hidden_sizes

    def linear(key, fan_in, fan_out):
        k_w, k_b = jax.random.split(key)
        bound = 1.0 / jnp.sqrt(jnp.float32(fan_in))
        # stored as [in, out] (transpose of PyTorch's [out, in])
        w = jax.random.uniform(k_w, (fan_in, fan_out), jnp.float32, -bound, bound)
        b = jax.random.uniform(k_b, (1, fan_out), jnp.float32, -bound, bound)
        return w, b

    keys = jax.random.split(key, 5 + obs_dim)
    we, be = linear(keys[0], obs_dim, e_outputs)                   # lineare
    w1, b1 = linear(keys[1], obs_dim, h0)                          # linear1
    w2, b2 = linear(keys[2], h0 + act_dim, h1)                     # linear2
    wv, bv = linear(keys[3], h1, 1)                                # V

    # attention_layers[i]: Linear(e_outputs, 2). Pack row 0 / row 1 of each
    # head's weight as column i of wa0 / wa1.
    wa0_cols, wa1_cols, ba0_cols, ba1_cols = [], [], [], []
    for i in range(obs_dim):
        w_i, b_i = linear(keys[4 + i], e_outputs, 2)               # [e_outputs, 2]
        wa0_cols.append(w_i[:, 0])
        wa1_cols.append(w_i[:, 1])
        ba0_cols.append(b_i[0, 0])
        ba1_cols.append(b_i[0, 1])
    wa0 = jnp.stack(wa0_cols, axis=1)                              # [e_outputs, obs_dim]
    wa1 = jnp.stack(wa1_cols, axis=1)
    ba0 = jnp.stack(ba0_cols).reshape(1, obs_dim)
    ba1 = jnp.stack(ba1_cols).reshape(1, obs_dim)

    return dict(
        we=we, be=be,
        wa0=wa0, ba0=ba0, wa1=wa1, ba1=ba1,
        wad=wa1 - wa0, bad=ba1 - ba0,          # fused attention-head difference
        w1=w1, b1=b1,
        w2x=w2[:h0, :], w2a=w2[h0:, :], b2=b2,
        wv=wv.reshape(1, h1), wv_col=wv.reshape(h1, 1), bv=bv.reshape(1, 1),
    )


# ----------------------------------------------------------------------------
# Wrapper
# ----------------------------------------------------------------------------
def _choose_tile(batch, max_tile):
    # Large batches: fixed 512-row tile (multiple of 8/128/256 -> MXU + lane
    # friendly, ~0.5 MiB of per-tile VMEM so safe on v5e/v6e/v7x budgets).
    if batch >= max_tile:
        return max_tile
    # Small batches: one sublane-aligned tile covering the whole (padded) batch.
    return max(8, ((batch + 7) // 8) * 8)


def attention_critic_forward(obs, act, params, with_attention=True, max_tile=512):
    batch, obs_dim = obs.shape
    act_dim = act.shape[1]
    dtype = jnp.float32

    tb = _choose_tile(batch, max_tile)
    n_tiles = pl.cdiv(batch, tb)
    padded = n_tiles * tb
    if padded != batch:
        # Pad rather than shrink the tile: keeps one uniform, (8,128)-valid
        # block shape and full pipelining efficiency.
        obs = jnp.pad(obs, ((0, padded - batch), (0, 0)))
        act = jnp.pad(act, ((0, padded - batch), (0, 0)))

    def row_spec(width):                       # batch-tiled activations
        return pl.BlockSpec((tb, width), lambda i: (i, 0))

    def resident(arr):                         # weights: constant block, no re-DMA
        return pl.BlockSpec(arr.shape, lambda i: (0, 0))

    cparams = pltpu.CompilerParams(dimension_semantics=("parallel",))

    if with_attention:
        weights = (params["we"], params["be"], params["wad"], params["bad"],
                   params["w1"], params["b1"],
                   params["w2x"], params["w2a"], params["b2"],
                   params["wv_col"], params["bv"])
        v_t, att_t = pl.pallas_call(
            _attention_critic_kernel,
            grid=(n_tiles,),
            in_specs=[row_spec(obs_dim), row_spec(act_dim)]
                     + [resident(w) for w in weights],
            out_specs=(pl.BlockSpec((1, tb), lambda i: (0, i)),
                       pl.BlockSpec((obs_dim, tb), lambda i: (0, i))),
            out_shape=(jax.ShapeDtypeStruct((1, padded), dtype),
                       jax.ShapeDtypeStruct((obs_dim, padded), dtype)),
            compiler_params=cparams,
        )(obs, act, *weights)
        v = v_t[:, :batch].T                    # back to (batch, 1)
        attention = att_t[:, :batch].T          # back to (batch, obs_dim)
        return v, attention
    else:
        weights = (params["w1"], params["b1"],
                   params["w2x"], params["w2a"], params["b2"],
                   params["wv_col"], params["bv"])
        v_t = pl.pallas_call(
            _critic_kernel,
            grid=(n_tiles,),
            in_specs=[row_spec(obs_dim), row_spec(act_dim)]
                     + [resident(w) for w in weights],
            out_specs=pl.BlockSpec((1, tb), lambda i: (0, i)),
            out_shape=jax.ShapeDtypeStruct((1, padded), dtype),
            compiler_params=cparams,
        )(obs, act, *weights)
        return v_t[:, :batch].T, None


# ----------------------------------------------------------------------------
# Pure-JAX reference (mirrors the PyTorch forward exactly)
# ----------------------------------------------------------------------------
def reference_forward(obs, act, params, with_attention=True):
    attention = None
    state_attention = obs
    if with_attention:
        e = jnp.tanh(obs @ params["we"] + params["be"])
        a0 = e @ params["wa0"] + params["ba0"]
        a1 = e @ params["wa1"] + params["ba1"]
        m = jnp.maximum(a0, a1)
        attention = jnp.exp(a1 - m) / (jnp.exp(a0 - m) + jnp.exp(a1 - m))
        state_attention = obs * attention
    x = jax.nn.relu(state_attention @ params["w1"] + params["b1"])
    x = jax.nn.relu(x @ params["w2x"] + act @ params["w2a"] + params["b2"])
    v = jnp.sum(x * params["wv"], axis=1, keepdims=True) + params["bv"]
    return v, attention


if __name__ == "__main__":
    # Small shapes consistent with the module's forward.
    obs_dim = 8
    act_dim = 8
    hidden_sizes = (32, 32)
    e_outputs = 16

    key = jax.random.PRNGKey(0)
    k_obs, k_act, k_params, k_obs2, k_act2 = jax.random.split(key, 5)
    params = init_params(k_params, obs_dim, act_dim, hidden_sizes, e_outputs)

    # ---- small batch (single grid step) ----
    batch = 8
    obs = jax.random.normal(k_obs, (batch, obs_dim), jnp.float32)
    act = jax.random.normal(k_act, (batch, act_dim), jnp.float32)

    v, attention = attention_critic_forward(obs, act, params, with_attention=True)
    v = jax.block_until_ready(v)
    attention = jax.block_until_ready(attention)
    v_ref, att_ref = reference_forward(obs, act, params, with_attention=True)
    assert v.shape == (batch, 1) and attention.shape == (batch, obs_dim)
    assert jnp.allclose(v, v_ref, atol=1e-4, rtol=1e-4)
    assert jnp.allclose(attention, att_ref, atol=1e-4, rtol=1e-4)

    v2, att2 = attention_critic_forward(obs, act, params, with_attention=False)
    v2 = jax.block_until_ready(v2)
    v2_ref, _ = reference_forward(obs, act, params, with_attention=False)
    assert att2 is None
    assert jnp.allclose(v2, v2_ref, atol=1e-4, rtol=1e-4)

    # ---- larger batch (multi-tile grid + batch padding path) ----
    batch_l = 1000
    obs_l = jax.random.normal(k_obs2, (batch_l, obs_dim), jnp.float32)
    act_l = jax.random.normal(k_act2, (batch_l, act_dim), jnp.float32)
    v_l, att_l = attention_critic_forward(obs_l, act_l, params, with_attention=True)
    v_l = jax.block_until_ready(v_l)
    att_l = jax.block_until_ready(att_l)
    v_l_ref, att_l_ref = reference_forward(obs_l, act_l, params, with_attention=True)
    assert v_l.shape == (batch_l, 1) and att_l.shape == (batch_l, obs_dim)
    assert jnp.allclose(v_l, v_l_ref, atol=1e-4, rtol=1e-4)
    assert jnp.allclose(att_l, att_l_ref, atol=1e-4, rtol=1e-4)

    print("KERNEL_OK")
</pallas_src>

<mosaic_0001>
module attributes {stable_mosaic.version = 11 : i64} {
  func.func @_attention_critic_kernel(%arg0: i32, %arg1: memref<8x8xf32, #tpu.memory_space<vmem>>, %arg2: memref<8x8xf32, #tpu.memory_space<vmem>>, %arg3: memref<8x16xf32, #tpu.memory_space<vmem>>, %arg4: memref<1x16xf32, #tpu.memory_space<vmem>>, %arg5: memref<16x8xf32, #tpu.memory_space<vmem>>, %arg6: memref<1x8xf32, #tpu.memory_space<vmem>>, %arg7: memref<8x32xf32, #tpu.memory_space<vmem>>, %arg8: memref<1x32xf32, #tpu.memory_space<vmem>>, %arg9: memref<32x32xf32, #tpu.memory_space<vmem>>, %arg10: memref<8x32xf32, #tpu.memory_space<vmem>>, %arg11: memref<1x32xf32, #tpu.memory_space<vmem>>, %arg12: memref<32x1xf32, #tpu.memory_space<vmem>>, %arg13: memref<1x1xf32, #tpu.memory_space<vmem>>, %arg14: memref<1x8xf32, #tpu.memory_space<vmem>>, %arg15: memref<8x8xf32, #tpu.memory_space<vmem>>) attributes {dimension_semantics = [#tpu.dimension_semantics<parallel>], iteration_bounds = array<i64: 1>, scalar_prefetch = 0 : i64, scratch_operands = 0 : i64, tpu.core_type = #tpu.core_type<tc>, window_params = [{transform_indices = @transform_0, window_bounds = array<i64: 8, 8>}, {transform_indices = @transform_1, window_bounds = array<i64: 8, 8>}, {pipeline_mode = #tpu.pipeline_mode<synchronous>, transform_indices = @transform_2, window_bounds = array<i64: 8, 16>}, {pipeline_mode = #tpu.pipeline_mode<synchronous>, transform_indices = @transform_3, window_bounds = array<i64: 1, 16>}, {pipeline_mode = #tpu.pipeline_mode<synchronous>, transform_indices = @transform_4, window_bounds = array<i64: 16, 8>}, {pipeline_mode = #tpu.pipeline_mode<synchronous>, transform_indices = @transform_5, window_bounds = array<i64: 1, 8>}, {pipeline_mode = #tpu.pipeline_mode<synchronous>, transform_indices = @transform_6, window_bounds = array<i64: 8, 32>}, {pipeline_mode = #tpu.pipeline_mode<synchronous>, transform_indices = @transform_7, window_bounds = array<i64: 1, 32>}, {pipeline_mode = #tpu.pipeline_mode<synchronous>, transform_indices = @transform_8, window_bounds = array<i64: 32, 32>}, {pipeline_mode = #tpu.pipeline_mode<synchronous>, transform_indices = @transform_9, window_bounds = array<i64: 8, 32>}, {pipeline_mode = #tpu.pipeline_mode<synchronous>, transform_indices = @transform_10, window_bounds = array<i64: 1, 32>}, {pipeline_mode = #tpu.pipeline_mode<synchronous>, transform_indices = @transform_11, window_bounds = array<i64: 32, 1>}, {pipeline_mode = #tpu.pipeline_mode<synchronous>, transform_indices = @transform_12, window_bounds = array<i64: 1, 1>}, {transform_indices = @transform_13, window_bounds = array<i64: 1, 8>}, {transform_indices = @transform_14, window_bounds = array<i64: 8, 8>}]} {
    %c0 = arith.constant 0 : index
    %c0_0 = arith.constant 0 : index
    %0 = vector.load %arg1[%c0, %c0_0] : memref<8x8xf32, #tpu.memory_space<vmem>>, vector<8x8xf32>
    %c0_1 = arith.constant 0 : index
    %c0_2 = arith.constant 0 : index
    %1 = vector.load %arg2[%c0_1, %c0_2] : memref<8x8xf32, #tpu.memory_space<vmem>>, vector<8x8xf32>
    %c0_3 = arith.constant 0 : index
    %c0_4 = arith.constant 0 : index
    %2 = vector.load %arg3[%c0_3, %c0_4] : memref<8x16xf32, #tpu.memory_space<vmem>>, vector<8x16xf32>
    %cst = arith.constant dense<0.000000e+00> : vector<8x16xf32>
    %3 = tpu.matmul %0, %2, %cst {dimension_numbers = #tpu.dot_dimension_numbers<[1], [0], [0], [1], [0, 0, 1, 1], [], []>} : vector<8x8xf32>, vector<8x16xf32>, vector<8x16xf32> -> vector<8x16xf32>
    %c0_5 = arith.constant 0 : index
    %c0_6 = arith.constant 0 : index
    %4 = vector.load %arg4[%c0_5, %c0_6] : memref<1x16xf32, #tpu.memory_space<vmem>>, vector<1x16xf32>
    %5 = vector.broadcast %4 : vector<1x16xf32> to vector<8x16xf32>
    %6 = arith.addf %3, %5 : vector<8x16xf32>
    %7 = math.tanh %6 : vector<8x16xf32>
    %c0_7 = arith.constant 0 : index
    %c0_8 = arith.constant 0 : index
    %8 = vector.load %arg5[%c0_7, %c0_8] : memref<16x8xf32, #tpu.memory_space<vmem>>, vector<16x8xf32>
    %cst_9 = arith.constant dense<0.000000e+00> : vector<8x8xf32>
    %9 = tpu.matmul %7, %8, %cst_9 {dimension_numbers = #tpu.dot_dimension_numbers<[1], [0], [0], [1], [0, 0, 1, 1], [], []>} : vector<8x16xf32>, vector<16x8xf32>, vector<8x8xf32> -> vector<8x8xf32>
    %c0_10 = arith.constant 0 : index
    %c0_11 = arith.constant 0 : index
    %10 = vector.load %arg6[%c0_10, %c0_11] : memref<1x8xf32, #tpu.memory_space<vmem>>, vector<1x8xf32>
    %11 = vector.broadcast %10 : vector<1x8xf32> to vector<8x8xf32>
    %12 = arith.addf %9, %11 : vector<8x8xf32>
    %cst_12 = arith.constant 0.000000e+00 : f32
    %13 = vector.broadcast %cst_12 : f32 to vector<8x8xf32>
    %14 = arith.subf %13, %12 : vector<8x8xf32>
    %15 = math.exp %14 : vector<8x8xf32>
    %cst_13 = arith.constant 1.000000e+00 : f32
    %16 = vector.broadcast %cst_13 : f32 to vector<8x8xf32>
    %17 = arith.addf %16, %15 : vector<8x8xf32>
    %cst_14 = arith.constant 1.000000e+00 : f32
    %18 = vector.broadcast %cst_14 : f32 to vector<8x8xf32>
    %19 = arith.divf %18, %17 : vector<8x8xf32>
    %20 = tpu.transpose %19, [1, 0] : vector<8x8xf32> -> vector<8x8xf32>
    %c0_15 = arith.constant 0 : index
    %c0_16 = arith.constant 0 : index
    %21 = vector.load %arg15[%c0_15, %c0_16] : memref<8x8xf32, #tpu.memory_space<vmem>>, vector<8x8xf32>
    tpu.vector_store %arg15[%c0_15, %c0_16], %20 {strides = array<i32>} : memref<8x8xf32, #tpu.memory_space<vmem>>, vector<8x8xf32>,
    %22 = arith.mulf %0, %19 : vector<8x8xf32>
    %c0_17 = arith.constant 0 : index
    %c0_18 = arith.constant 0 : index
    %23 = vector.load %arg7[%c0_17, %c0_18] : memref<8x32xf32, #tpu.memory_space<vmem>>, vector<8x32xf32>
    %cst_19 = arith.constant dense<0.000000e+00> : vector<8x32xf32>
    %24 = tpu.matmul %22, %23, %cst_19 {dimension_numbers = #tpu.dot_dimension_numbers<[1], [0], [0], [1], [0, 0, 1, 1], [], []>} : vector<8x8xf32>, vector<8x32xf32>, vector<8x32xf32> -> vector<8x32xf32>
    %c0_20 = arith.constant 0 : index
    %c0_21 = arith.constant 0 : index
    %25 = vector.load %arg8[%c0_20, %c0_21] : memref<1x32xf32, #tpu.memory_space<vmem>>, vector<1x32xf32>
    %26 = vector.broadcast %25 : vector<1x32xf32> to vector<8x32xf32>
    %27 = arith.addf %24, %26 : vector<8x32xf32>
    %cst_22 = arith.constant 0.000000e+00 : f32
    %28 = vector.broadcast %cst_22 : f32 to vector<8x32xf32>
    %29 = arith.maximumf %27, %28 : vector<8x32xf32>
    %c0_23 = arith.constant 0 : index
    %c0_24 = arith.constant 0 : index
    %30 = vector.load %arg9[%c0_23, %c0_24] : memref<32x32xf32, #tpu.memory_space<vmem>>, vector<32x32xf32>
    %cst_25 = arith.constant dense<0.000000e+00> : vector<8x32xf32>
    %31 = tpu.matmul %29, %30, %cst_25 {dimension_numbers = #tpu.dot_dimension_numbers<[1], [0], [0], [1], [0, 0, 1, 1], [], []>} : vector<8x32xf32>, vector<32x32xf32>, vector<8x32xf32> -> vector<8x32xf32>
    %c0_26 = arith.constant 0 : index
    %c0_27 = arith.constant 0 : index
    %32 = vector.load %arg10[%c0_26, %c0_27] : memref<8x32xf32, #tpu.memory_space<vmem>>, vector<8x32xf32>
    %cst_28 = arith.constant dense<0.000000e+00> : vector<8x32xf32>
    %33 = tpu.matmul %1, %32, %cst_28 {dimension_numbers = #tpu.dot_dimension_numbers<[1], [0], [0], [1], [0, 0, 1, 1], [], []>} : vector<8x8xf32>, vector<8x32xf32>, vector<8x32xf32> -> vector<8x32xf32>
    %34 = arith.addf %31, %33 : vector<8x32xf32>
    %c0_29 = arith.constant 0 : index
    %c0_30 = arith.constant 0 : index
    %35 = vector.load %arg11[%c0_29, %c0_30] : memref<1x32xf32, #tpu.memory_space<vmem>>, vector<1x32xf32>
    %36 = vector.broadcast %35 : vector<1x32xf32> to vector<8x32xf32>
    %37 = arith.addf %34, %36 : vector<8x32xf32>
    %cst_31 = arith.constant 0.000000e+00 : f32
    %38 = vector.broadcast %cst_31 : f32 to vector<8x32xf32>
    %39 = arith.maximumf %37, %38 : vector<8x32xf32>
    %40 = tpu.transpose %39, [1, 0] : vector<8x32xf32> -> vector<32x8xf32>
    %c0_32 = arith.constant 0 : index
    %c0_33 = arith.constant 0 : index
    %41 = vector.load %arg12[%c0_32, %c0_33] : memref<32x1xf32, #tpu.memory_space<vmem>>, vector<32x1xf32>
    %42 = vector.broadcast %41 : vector<32x1xf32> to vector<32x8xf32>
    %43 = arith.mulf %40, %42 : vector<32x8xf32>
    %cst_34 = arith.constant dense<0.000000e+00> : vector<8xf32>
    %44 = vector.multi_reduction <add>, %43, %cst_34 [0] : vector<32x8xf32> to vector<8xf32>
    %45 = vector.shape_cast %44 : vector<8xf32> to vector<1x8xf32>
    %c0_35 = arith.constant 0 : index
    %c0_36 = arith.constant 0 : index
    %46 = vector.load %arg13[%c0_35, %c0_36] : memref<1x1xf32, #tpu.memory_space<vmem>>, vector<1x1xf32>
    %47 = vector.broadcast %46 : vector<1x1xf32> to vector<1x8xf32>
    %48 = arith.addf %45, %47 : vector<1x8xf32>
    %c0_37 = arith.constant 0 : index
    %c0_38 = arith.constant 0 : index
    %49 = vector.load %arg14[%c0_37, %c0_38] : memref<1x8xf32, #tpu.memory_space<vmem>>, vector<1x8xf32>
    tpu.vector_store %arg14[%c0_37, %c0_38], %48 {strides = array<i32>} : memref<1x8xf32, #tpu.memory_space<vmem>>, vector<1x8xf32>,
    return
  }
  func.func @transform_0(%arg0: i32) -> (i32, i32) {
    %c0_i32 = arith.constant 0 : i32
    %c0_i32_0 = arith.constant 0 : i32
    return %arg0, %c0_i32 : i32, i32
  }
  func.func @transform_1(%arg0: i32) -> (i32, i32) {
    %c0_i32 = arith.constant 0 : i32
    %c0_i32_0 = arith.constant 0 : i32
    return %arg0, %c0_i32 : i32, i32
  }
  func.func @transform_2(%arg0: i32) -> (i32, i32) {
    %c0_i32 = arith.constant 0 : i32
    %c0_i32_0 = arith.constant 0 : i32
    %c0_i32_1 = arith.constant 0 : i32
    return %c0_i32, %c0_i32_0 : i32, i32
  }
  func.func @transform_3(%arg0: i32) -> (i32, i32) {
    %c0_i32 = arith.constant 0 : i32
    %c0_i32_0 = arith.constant 0 : i32
    %c0_i32_1 = arith.constant 0 : i32
    return %c0_i32, %c0_i32_0 : i32, i32
  }
  func.func @transform_4(%arg0: i32) -> (i32, i32) {
    %c0_i32 = arith.constant 0 : i32
    %c0_i32_0 = arith.constant 0 : i32
    %c0_i32_1 = arith.constant 0 : i32
    return %c0_i32, %c0_i32_0 : i32, i32
  }
  func.func @transform_5(%arg0: i32) -> (i32, i32) {
    %c0_i32 = arith.constant 0 : i32
    %c0_i32_0 = arith.constant 0 : i32
    %c0_i32_1 = arith.constant 0 : i32
    return %c0_i32, %c0_i32_0 : i32, i32
  }
  func.func @transform_6(%arg0: i32) -> (i32, i32) {
    %c0_i32 = arith.constant 0 : i32
    %c0_i32_0 = arith.constant 0 : i32
    %c0_i32_1 = arith.constant 0 : i32
    return %c0_i32, %c0_i32_0 : i32, i32
  }
  func.func @transform_7(%arg0: i32) -> (i32, i32) {
    %c0_i32 = arith.constant 0 : i32
    %c0_i32_0 = arith.constant 0 : i32
    %c0_i32_1 = arith.constant 0 : i32
    return %c0_i32, %c0_i32_0 : i32, i32
  }
  func.func @transform_8(%arg0: i32) -> (i32, i32) {
    %c0_i32 = arith.constant 0 : i32
    %c0_i32_0 = arith.constant 0 : i32
    %c0_i32_1 = arith.constant 0 : i32
    return %c0_i32, %c0_i32_0 : i32, i32
  }
  func.func @transform_9(%arg0: i32) -> (i32, i32) {
    %c0_i32 = arith.constant 0 : i32
    %c0_i32_0 = arith.constant 0 : i32
    %c0_i32_1 = arith.constant 0 : i32
    return %c0_i32, %c0_i32_0 : i32, i32
  }
  func.func @transform_10(%arg0: i32) -> (i32, i32) {
    %c0_i32 = arith.constant 0 : i32
    %c0_i32_0 = arith.constant 0 : i32
    %c0_i32_1 = arith.constant 0 : i32
    return %c0_i32, %c0_i32_0 : i32, i32
  }
  func.func @transform_11(%arg0: i32) -> (i32, i32) {
    %c0_i32 = arith.constant 0 : i32
    %c0_i32_0 = arith.constant 0 : i32
    %c0_i32_1 = arith.constant 0 : i32
    return %c0_i32, %c0_i32_0 : i32, i32
  }
  func.func @transform_12(%arg0: i32) -> (i32, i32) {
    %c0_i32 = arith.constant 0 : i32
    %c0_i32_0 = arith.constant 0 : i32
    %c0_i32_1 = arith.constant 0 : i32
    return %c0_i32, %c0_i32_0 : i32, i32
  }
  func.func @transform_13(%arg0: i32) -> (i32, i32) {
    %c0_i32 = arith.constant 0 : i32
    %c0_i32_0 = arith.constant 0 : i32
    return %c0_i32, %arg0 : i32, i32
  }
  func.func @transform_14(%arg0: i32) -> (i32, i32) {
    %c0_i32 = arith.constant 0 : i32
    %c0_i32_0 = arith.constant 0 : i32
    return %c0_i32, %arg0 : i32, i32
  }
}

</mosaic_0001>

<llo_original>
// kernel: tpu_custom_call.1
$region0: #{tpu_custom_call.1}
  #allocation0 [shape = 'u32[]', space=smem, size = 0x4, offset = 0x4, fixed_abs, tag = 'smem constant byte address 0x4 - core index']
  #allocation1 [shape = 'u32[72,128]{1,0:T(1,128)}', space=vmem, size = 0x9000, scoped, tag = 'internal scratch']
  #allocation2 [shape = 'f32[1,1]{1,0:T(1,128)S(1)}', space=vmem, size = 0x200, scoped, tag = 'scoped memory for tpu_custom_call.1']
  %s0 = inlined_call_operand.vmem [shape: f32[8,8], index: 0, kind: input, shape index: {}]
  %s1 = inlined_call_operand.vmem [shape: f32[8,8], index: 1, kind: input, shape index: {}]
  %s2 = inlined_call_operand.vmem [shape: f32[8,16], index: 2, kind: input, shape index: {}]
  %s3 = inlined_call_operand.vmem [shape: f32[1,16], index: 3, kind: input, shape index: {}]
  %s4 = inlined_call_operand.vmem [shape: f32[16,8], index: 4, kind: input, shape index: {}]
  %s5 = inlined_call_operand.hbm [shape: f32[1,8], index: 5, kind: input, shape index: {}]
  %s6 = inlined_call_operand.vmem [shape: f32[8,32], index: 6, kind: input, shape index: {}]
  %s7 = inlined_call_operand.hbm [shape: f32[1,32], index: 7, kind: input, shape index: {}]
  %s8 = inlined_call_operand.vmem [shape: f32[32,32], index: 8, kind: input, shape index: {}]
  %s9 = inlined_call_operand.hbm [shape: f32[8,32], index: 9, kind: input, shape index: {}]
  %s10 = inlined_call_operand.vmem [shape: f32[1,32], index: 10, kind: input, shape index: {}]
  %s11 = inlined_call_operand.vmem [shape: f32[32,1], index: 11, kind: input, shape index: {}]
  %s12 = inlined_call_operand.<no memory space> [shape: f32[1,1], index: 12, kind: input, shape index: {}]
  %s13 = inlined_call_operand.hbm [shape: f32[1,8], index: 13, kind: output, shape index: {0}]
  %s14 = inlined_call_operand.hbm [shape: f32[8,8], index: 14, kind: output, shape index: {1}]
  %15 = xla_tuple %s13, %s14
  %s16 = sld [smem:[#allocation0]]
  $region82: #{tpu_custom_call.1} parent=0
    _
  %s18 = ssub.s32 1, %s16
  %s19 = scalar_select 0, %s18, %s16
  %v20 = vstv %s12
  %21 = vst [vmem:[#allocation2] sm:$0x1] %v20
  $region1: #{tpu_custom_call.1} parent=0
    #allocation3 [shape = 'u8[512]{0}', space=vmem, size = 0x400, scoped, tag = 'input window, operand 5, single buffered']
    #allocation4 [shape = 's32[1]{0}', space=sflag, size = 0x4, scoped, tag = 'scoped memory for tpu_custom_call.1']
    #allocation5 [shape = 's32[1]{0}', space=sflag, size = 0x4, scoped, tag = 'scoped memory for tpu_custom_call.1']
    #allocation6 [shape = 'u8[512]{0}', space=vmem, size = 0x400, scoped, tag = 'input window, operand 7, single buffered']
    #allocation7 [shape = 's32[1]{0}', space=sflag, size = 0x4, scoped, tag = 'scoped memory for tpu_custom_call.1']
    #allocation8 [shape = 'u8[4096]{0}', space=vmem, size = 0x1000, scoped, tag = 'input window, operand 9, single buffered']
    #allocation9 [shape = 'u8[512]{0}', space=vmem, size = 0x400, scoped, tag = 'output window, operand 0, single buffered']
    #allocation10 [shape = 'u8[4096]{0}', space=vmem, size = 0x1000, scoped, tag = 'output window, operand 1, single buffered']
    #allocation11 [shape = 's32[1]{0}', space=sflag, size = 0x4, scoped, tag = 'scoped memory for tpu_custom_call.1']
    %22 = vsyncpa [#allocation4], 0
    %23 = vsyncpa [#allocation7], 0
    %24 = vsyncpa [#allocation5], 0
    %25 = vsyncpa [#allocation11], 0
    // Predicated region
    $region2: #{tpu_custom_call.1} parent=1 // pred_check
      _
    $region3: #{tpu_custom_call.1} parent=1 // pred_check_branch
      %27 = sbr.rel (0) target = $region5
    $region4: #{tpu_custom_call.1} parent=1 // pred_region
      _
    $region5: #{tpu_custom_call.1} parent=1 // pred_fallthru
      _
    // Predicated region
    $region6: #{tpu_custom_call.1} parent=1 // pred_check
      _
    $region7: #{tpu_custom_call.1} parent=1 // pred_check_branch
      %29 = sbr.rel (0) target = $region9
    $region8: #{tpu_custom_call.1} parent=1 // pred_region
      _
    $region9: #{tpu_custom_call.1} parent=1 // pred_fallthru
      _
    // Predicated region
    $region10: #{tpu_custom_call.1} parent=1 // pred_check
      _
    $region11: #{tpu_custom_call.1} parent=1 // pred_check_branch
      %31 = sbr.rel (0) target = $region13
    $region12: #{tpu_custom_call.1} parent=1 // pred_region
      _
    $region13: #{tpu_custom_call.1} parent=1 // pred_fallthru
      _
    // Predicated region
    $region14: #{tpu_custom_call.1} parent=1 // pred_check
      _
    $region15: #{tpu_custom_call.1} parent=1 // pred_check_branch
      %33 = sbr.rel (0) target = $region17
    $region16: #{tpu_custom_call.1} parent=1 // pred_region
      _
    $region17: #{tpu_custom_call.1} parent=1 // pred_fallthru
      _
    // Predicated region
    $region18: #{tpu_custom_call.1} parent=1 // pred_check
      _
    $region19: #{tpu_custom_call.1} parent=1 // pred_check_branch
      %35 = sbr.rel (0) target = $region21
    $region20: #{tpu_custom_call.1} parent=1 // pred_region
      _
    $region21: #{tpu_custom_call.1} parent=1 // pred_fallthru
      _
    // Predicated region
    $region22: #{tpu_custom_call.1} parent=1 // pred_check
      _
    $region23: #{tpu_custom_call.1} parent=1 // pred_check_branch
      %37 = sbr.rel (0) target = $region25
    $region24: #{tpu_custom_call.1} parent=1 // pred_region
      %39 = vsyncadd [#allocation4], 0
      %s41 = sshll.u32 %s5, 4
      %s42 = int_to_ptr.hbm [resolvable:$true] %s41
      %s43 = sshll.u32 [#allocation3], 4
      %s44 = int_to_ptr.vmem [resolvable:$true] %s43
      %46 = dma.hbm_to_vmem [thread:$0]  %s42, 16, %s44, [#allocation4]
    $region25: #{tpu_custom_call.1} parent=1 // pred_fallthru
      _
    // Predicated region
    $region26: #{tpu_custom_call.1} parent=1 // pred_check
      _
    $region27: #{tpu_custom_call.1} parent=1 // pred_check_branch
      %48 = sbr.rel (0) target = $region29
    $region28: #{tpu_custom_call.1} parent=1 // pred_region
      _
    $region29: #{tpu_custom_call.1} parent=1 // pred_fallthru
      _
    // Predicated region
    $region30: #{tpu_custom_call.1} parent=1 // pred_check
      _
    $region31: #{tpu_custom_call.1} parent=1 // pred_check_branch
      %50 = sbr.rel (0) target = $region33
    $region32: #{tpu_custom_call.1} parent=1 // pred_region
      %52 = vsyncadd [#allocation7], 0
      %s54 = sshll.u32 %s7, 4
      %s55 = int_to_ptr.hbm [resolvable:$true] %s54
      %s56 = sshll.u32 [#allocation6], 4
      %s57 = int_to_ptr.vmem [resolvable:$true] %s56
      %59 = dma.hbm_to_vmem [thread:$0]  %s55, 16, %s57, [#allocation7]
    $region33: #{tpu_custom_call.1} parent=1 // pred_fallthru
      _
    // Predicated region
    $region34: #{tpu_custom_call.1} parent=1 // pred_check
      _
    $region35: #{tpu_custom_call.1} parent=1 // pred_check_branch
      %61 = sbr.rel (0) target = $region37
    $region36: #{tpu_custom_call.1} parent=1 // pred_region
      _
    $region37: #{tpu_custom_call.1} parent=1 // pred_fallthru
      _
    // Predicated region
    $region38: #{tpu_custom_call.1} parent=1 // pred_check
      _
    $region39: #{tpu_custom_call.1} parent=1 // pred_check_branch
      %63 = sbr.rel (0) target = $region41
    $region40: #{tpu_custom_call.1} parent=1 // pred_region
      %65 = vsyncadd [#allocation7], 0
      %s67 = sshll.u32 %s9, 4
      %s68 = int_to_ptr.hbm [resolvable:$true] %s67
      %s69 = sshll.u32 [#allocation8], 4
      %s70 = int_to_ptr.vmem [resolvable:$true] %s69
      %72 = dma.hbm_to_vmem [thread:$0]  %s68, 128, %s70, [#allocation7]
    $region41: #{tpu_custom_call.1} parent=1 // pred_fallthru
      _
    // Predicated region
    $region42: #{tpu_custom_call.1} parent=1 // pred_check
      _
    $region43: #{tpu_custom_call.1} parent=1 // pred_check_branch
      %74 = sbr.rel (0) target = $region45
    $region44: #{tpu_custom_call.1} parent=1 // pred_region
      _
    $region45: #{tpu_custom_call.1} parent=1 // pred_fallthru
      _
    // Predicated region
    $region46: #{tpu_custom_call.1} parent=1 // pred_check
      _
    $region47: #{tpu_custom_call.1} parent=1 // pred_check_branch
      %76 = sbr.rel (0) target = $region49
    $region48: #{tpu_custom_call.1} parent=1 // pred_region
      _
    $region49: #{tpu_custom_call.1} parent=1 // pred_fallthru
      _
    // Predicated region
    $region50: #{tpu_custom_call.1} parent=1 // pred_check
      _
    $region51: #{tpu_custom_call.1} parent=1 // pred_check_branch
      %78 = sbr.rel (0) target = $region53
    $region52: #{tpu_custom_call.1} parent=1 // pred_region
      _
    $region53: #{tpu_custom_call.1} parent=1 // pred_fallthru
      _
    // Predicated region
    $region54: #{tpu_custom_call.1} parent=1 // pred_check
      _
    $region55: #{tpu_custom_call.1} parent=1 // pred_check_branch
      %80 = sbr.rel (0) target = $region57
    $region56: #{tpu_custom_call.1} parent=1 // pred_region
      %82 = dma.done [#allocation4], 16
    $region57: #{tpu_custom_call.1} parent=1 // pred_fallthru
      _
    // Predicated region
    $region58: #{tpu_custom_call.1} parent=1 // pred_check
      _
    $region59: #{tpu_custom_call.1} parent=1 // pred_check_branch
      %84 = sbr.rel (0) target = $region61
    $region60: #{tpu_custom_call.1} parent=1 // pred_region
      %86 = dma.done [#allocation7], 16
    $region61: #{tpu_custom_call.1} parent=1 // pred_fallthru
      _
    // Predicated region
    $region62: #{tpu_custom_call.1} parent=1 // pred_check
      _
    $region63: #{tpu_custom_call.1} parent=1 // pred_check_branch
      %88 = sbr.rel (0) target = $region65
    $region64: #{tpu_custom_call.1} parent=1 // pred_region
      %90 = dma.done [#allocation7], 128
    $region65: #{tpu_custom_call.1} parent=1 // pred_fallthru
      _
    %v91 = vld [vmem:[%s0] sm:$0xff]
    %v92 = vld [vmem:[%s1] sm:$0xff]
    %v93 = vld [vmem:[%s2] sm:$0xff]
    %v94 = vld [vmem:[%s3] sm:$0x1]
    %v96 = vperm.slane %v94, 0
    %vm98 = vcmask 64512
    %v100 = vsel %vm98, %v91, 0
    %102 = vmatpush.msra.mxu0 0.0
    %103 = vmatpush.msra.mxu0 0.0
    %104 = vmatpush.msra.mxu0 0.0
    %105 = vmatpush.msra.mxu0 0.0
    %106 = vmatpush.msra.mxu0 0.0
    %107 = vmatpush.msra.mxu0 0.0
    %108 = vmatpush.msra.mxu0 0.0
    %109 = vmatpush.msra.mxu0 0.0
    %110 = vmatpush.msra.mxu0 0.0
    %111 = vmatpush.msra.mxu0 0.0
    %112 = vmatpush.msra.mxu0 0.0
    %113 = vmatpush.msra.mxu0 0.0
    %114 = vmatpush.msra.mxu0 0.0
    %115 = vmatpush.msra.mxu0 0.0
    %116 = vmatpush.msra.mxu0 0.0
    %117 = vmatpush.msra.mxu0 %v93
    %118 = vmatmul.f32.gmra.mxu0 %v100
    %v119 = vpop.f32.mrf.mxu0
    %v120 = vadd.f32 %v96, %v119
    %121 = vdwg.mxu0
    %v122 = vtanh.pop %v120
    %v123 = vld [vmem:[%s4] sm:$0xff]
    %v124 = vld [vmem:[%s4 + $0x8] sm:$0xff]
    %v125 = vld [vmem:[#allocation3] sm:$0x1]
    %v127 = vperm.slane %v125, 0
    %vm129 = vcmask 130048
    %v131 = vsel %vm129, %v122, 0
    %133 = vmatpush.msra.mxu0 0.0
    %134 = vmatpush.msra.mxu0 0.0
    %135 = vmatpush.msra.mxu0 0.0
    %136 = vmatpush.msra.mxu0 0.0
    %137 = vmatpush.msra.mxu0 0.0
    %138 = vmatpush.msra.mxu0 0.0
    %139 = vmatpush.msra.mxu0 0.0
    %140 = vmatpush.msra.mxu0 0.0
    %141 = vmatpush.msra.mxu0 0.0
    %142 = vmatpush.msra.mxu0 0.0
    %143 = vmatpush.msra.mxu0 0.0
    %144 = vmatpush.msra.mxu0 0.0
    %145 = vmatpush.msra.mxu0 0.0
    %146 = vmatpush.msra.mxu0 0.0
    %147 = vmatpush.msra.mxu0 %v124
    %148 = vmatpush.msra.mxu0 %v123
    %149 = vmatmul.f32.gmra.mxu0 %v131
    %v150 = vpop.f32.mrf.mxu0
    %v151 = vadd.f32 %v127, %v150
    %152 = vdwg.mxu0
    %v153 = vsub.f32 0.0, %v151
    %v154 = vmul.f32 %v153, 1.442695
    %v155 = vpow.pop %v154
    %v156 = vadd.f32 %v155, 1.0
    %v157 = vrcp.pop %v156
    %v158 = vmul.f32 %v156, %v157
    %v159 = vsub.f32 1.0, %v158
    %v160 = vmul.f32 %v157, %v159
    %v161 = vadd.f32 %v157, %v160
    %vm162 = vweird.f32 %v156
    %vm163 = vweird.f32 %v157
    %vm164 = vmor %vm162, %vm163
    %v165 = vsel %vm164, %v157, %v161
    %v166 = vand.u32 2147483647, %v156
    %vm167 = vcmp.eq.f32.partialorder %v166, 8.507059e+37
    %v168 = vand.u32 %v156, 2147483648
    %v169 = vor.u32 1.1754944e-38, %v168
    %v170 = vsel %vm167, %v169, %v165
    %v171 = vmul.f32 1.0, %v170
    %172 = vxpose.xlu0.b32.start [1/16] %v171, 128
    %173 = vxpose.xlu0.b32.cont [2/16] 0.0, 128
    %174 = vxpose.xlu0.b32.cont [3/16] 0.0, 128
    %175 = vxpose.xlu0.b32.cont [4/16] 0.0, 128
    %176 = vxpose.xlu0.b32.cont [5/16] 0.0, 128
    %177 = vxpose.xlu0.b32.cont [6/16] 0.0, 128
    %178 = vxpose.xlu0.b32.cont [7/16] 0.0, 128
    %179 = vxpose.xlu0.b32.cont [8/16] 0.0, 128
    %180 = vxpose.xlu0.b32.cont [9/16] 0.0, 128
    %181 = vxpose.xlu0.b32.cont [10/16] 0.0, 128
    %182 = vxpose.xlu0.b32.cont [11/16] 0.0, 128
    %183 = vxpose.xlu0.b32.cont [12/16] 0.0, 128
    %184 = vxpose.xlu0.b32.cont [13/16] 0.0, 128
    %185 = vxpose.xlu0.b32.cont [14/16] 0.0, 128
    %186 = vxpose.xlu0.b32.cont [15/16] 0.0, 128
    %187 = vxpose.xlu0.b32.end [16/16] 0.0, 128
    %v188 = vpop.trf.xlu0
    %v189 = vpop.trf.xlu0
    %v190 = vpop.trf.xlu0
    %v191 = vpop.trf.xlu0
    %v192 = vpop.trf.xlu0
    %v193 = vpop.trf.xlu0
    %v194 = vpop.trf.xlu0
    %v195 = vpop.trf.xlu0
    %v196 = vpop.trf.xlu0
    %v197 = vpop.trf.xlu0
    %v198 = vpop.trf.xlu0
    %v199 = vpop.trf.xlu0
    %v200 = vpop.trf.xlu0
    %v201 = vpop.trf.xlu0
    %v202 = vpop.trf.xlu0
    %v203 = vpop.trf.xlu0
    %204 = vst.msk [vmem:[#allocation10] sm:$0xff] %vm98, %v188
    %v205 = vmul.f32 %v91, %v171
    %v206 = vld [vmem:[%s6] sm:$0xff]
    %v207 = vld [vmem:[#allocation6] sm:$0x1]
    %v209 = vperm.slane %v207, 0
    %v212 = vsel %vm98, %v205, 0
    %214 = vmatpush.msra.mxu0 0.0
    %215 = vmatpush.msra.mxu0 0.0
    %216 = vmatpush.msra.mxu0 0.0
    %217 = vmatpush.msra.mxu0 0.0
    %218 = vmatpush.msra.mxu0 0.0
    %219 = vmatpush.msra.mxu0 0.0
    %220 = vmatpush.msra.mxu0 0.0
    %221 = vmatpush.msra.mxu0 0.0
    %222 = vmatpush.msra.mxu0 0.0
    %223 = vmatpush.msra.mxu0 0.0
    %224 = vmatpush.msra.mxu0 0.0
    %225 = vmatpush.msra.mxu0 0.0
    %226 = vmatpush.msra.mxu0 0.0
    %227 = vmatpush.msra.mxu0 0.0
    %228 = vmatpush.msra.mxu0 0.0
    %229 = vmatpush.msra.mxu0 %v206
    %230 = vmatmul.f32.gmra.mxu0 %v212
    %v231 = vpop.f32.mrf.mxu0
    %v232 = vadd.f32 %v209, %v231
    %233 = vdwg.mxu0
    %v234 = vmax.f32 %v232, 0.0
    %v235 = vld [vmem:[%s8] sm:$0xff]
    %v236 = vld [vmem:[%s8 + $0x8] sm:$0xff]
    %v237 = vld [vmem:[%s8 + $0x10] sm:$0xff]
    %v238 = vld [vmem:[%s8 + $0x18] sm:$0xff]
    %v239 = vld [vmem:[#allocation8] sm:$0xff]
    %v241 = vsel %vm98, %v92, 0
    %243 = vmatpush.msra.mxu0 0.0
    %244 = vmatpush.msra.mxu0 0.0
    %245 = vmatpush.msra.mxu0 0.0
    %246 = vmatpush.msra.mxu0 0.0
    %247 = vmatpush.msra.mxu0 0.0
    %248 = vmatpush.msra.mxu0 0.0
    %249 = vmatpush.msra.mxu0 0.0
    %250 = vmatpush.msra.mxu0 0.0
    %251 = vmatpush.msra.mxu0 0.0
    %252 = vmatpush.msra.mxu0 0.0
    %253 = vmatpush.msra.mxu0 0.0
    %254 = vmatpush.msra.mxu0 0.0
    %255 = vmatpush.msra.mxu0 0.0
    %256 = vmatpush.msra.mxu0 0.0
    %257 = vmatpush.msra.mxu0 0.0
    %258 = vmatpush.msra.mxu0 %v239
    %259 = vmatmul.f32.gmra.mxu0 %v241
    %v260 = vpop.f32.mrf.mxu0
    %v261 = vadd.f32 0.0, %v260
    %262 = vdwg.mxu0
    %vm263 = vcmask 261120
    %v265 = vsel %vm263, %v234, 0
    %267 = vmatpush.msra.mxu0 0.0
    %268 = vmatpush.msra.mxu0 0.0
    %269 = vmatpush.msra.mxu0 0.0
    %270 = vmatpush.msra.mxu0 0.0
    %271 = vmatpush.msra.mxu0 0.0
    %272 = vmatpush.msra.mxu0 0.0
    %273 = vmatpush.msra.mxu0 0.0
    %274 = vmatpush.msra.mxu0 0.0
    %275 = vmatpush.msra.mxu0 0.0
    %276 = vmatpush.msra.mxu0 0.0
    %277 = vmatpush.msra.mxu0 0.0
    %278 = vmatpush.msra.mxu0 0.0
    %279 = vmatpush.msra.mxu0 %v238
    %280 = vmatpush.msra.mxu0 %v237
    %281 = vmatpush.msra.mxu0 %v236
    %282 = vmatpush.msra.mxu0 %v235
    %283 = vmatmul.f32.gmra.mxu0 %v265
    %v284 = vpop.f32.mrf.mxu0
    %v285 = vadd.f32 %v261, %v284
    %286 = vdwg.mxu0
    %v287 = vld [vmem:[%s10] sm:$0x1]
    %v289 = vperm.slane %v287, 0
    %v291 = vadd.f32 %v285, %v289
    %v292 = vmax.f32 %v291, 0.0
    %293 = vxpose.xlu0.b32.start [1/16] %v292, 128
    %294 = vxpose.xlu0.b32.cont [2/16] 0.0, 128
    %295 = vxpose.xlu0.b32.cont [3/16] 0.0, 128
    %296 = vxpose.xlu0.b32.cont [4/16] 0.0, 128
    %297 = vxpose.xlu0.b32.cont [5/16] 0.0, 128
    %298 = vxpose.xlu0.b32.cont [6/16] 0.0, 128
    %299 = vxpose.xlu0.b32.cont [7/16] 0.0, 128
    %300 = vxpose.xlu0.b32.cont [8/16] 0.0, 128
    %301 = vxpose.xlu0.b32.cont [9/16] 0.0, 128
    %302 = vxpose.xlu0.b32.cont [10/16] 0.0, 128
    %303 = vxpose.xlu0.b32.cont [11/16] 0.0, 128
    %304 = vxpose.xlu0.b32.cont [12/16] 0.0, 128
    %305 = vxpose.xlu0.b32.cont [13/16] 0.0, 128
    %306 = vxpose.xlu0.b32.cont [14/16] 0.0, 128
    %307 = vxpose.xlu0.b32.cont [15/16] 0.0, 128
    %308 = vxpose.xlu0.b32.end [16/16] 0.0, 128
    %v309 = vpop.trf.xlu0
    %v310 = vpop.trf.xlu0
    %v311 = vpop.trf.xlu0
    %v312 = vpop.trf.xlu0
    %v313 = vpop.trf.xlu0
    %v314 = vpop.trf.xlu0
    %v315 = vpop.trf.xlu0
    %v316 = vpop.trf.xlu0
    %v317 = vpop.trf.xlu0
    %v318 = vpop.trf.xlu0
    %v319 = vpop.trf.xlu0
    %v320 = vpop.trf.xlu0
    %v321 = vpop.trf.xlu0
    %v322 = vpop.trf.xlu0
    %v323 = vpop.trf.xlu0
    %v324 = vpop.trf.xlu0
    %v325 = vld [vmem:[%s11] sm:$0xff]
    %v326 = vld [vmem:[%s11 + $0x8] sm:$0xff]
    %v327 = vld [vmem:[%s11 + $0x10] sm:$0xff]
    %v328 = vld [vmem:[%s11 + $0x18] sm:$0xff]
    %330 = vset.pattern.permute.xlu0 0
    %331 = vperm.xlu0 %330, %v325
    %v332 = vpop.permute.xlu0 %331
    %335 = vset.pattern.permute.xlu0 0
    %336 = vperm.xlu0 %335, %v326
    %v337 = vpop.permute.xlu0 %336
    %340 = vset.pattern.permute.xlu0 0
    %341 = vperm.xlu0 %340, %v327
    %v342 = vpop.permute.xlu0 %341
    %345 = vset.pattern.permute.xlu0 0
    %346 = vperm.xlu0 %345, %v328
    %v347 = vpop.permute.xlu0 %346
    %v349 = vmul.f32 %v309, %v332
    %v350 = vmul.f32 %v310, %v337
    %v351 = vmul.f32 %v311, %v342
    %v352 = vmul.f32 %v312, %v347
    %v353 = vsel %vm98, %v349, 0.0
    %v354 = vsel %vm98, %v350, 0.0
    %v355 = vadd.f32 %v353, %v354
    %v356 = vsel %vm98, %v351, 0.0
    %v357 = vadd.f32 %v355, %v356
    %v358 = vsel %vm98, %v352, 0.0
    %v359 = vadd.f32 %v357, %v358
    %v360 = vrot.slane %v359, 4
    %v361 = vadd.f32 %v359, %v360
    %v362 = vrot.slane %v361, 2
    %v363 = vadd.f32 %v361, %v362
    %v364 = vrot.slane %v363, 1
    %v365 = vadd.f32 %v363, %v364
    %v366 = vld [vmem:[#allocation2] sm:$0x1]
    %368 = vset.pattern.permute.xlu0 0
    %369 = vperm.xlu0 %368, %v366
    %v370 = vpop.permute.xlu0 %369
    %v372 = vperm.slane %v370, 0
    %v373 = vadd.f32 %v365, %v372
    %vm374 = vcmask 57344
    %375 = vst.msk [vmem:[#allocation9] sm:$0x1] %vm374, %v373
    // Predicated region
    $region66: #{tpu_custom_call.1} parent=1 // pred_check
      _
    $region67: #{tpu_custom_call.1} parent=1 // pred_check_branch
      %377 = sbr.rel (0) target = $region69
    $region68: #{tpu_custom_call.1} parent=1 // pred_region
      %379 = vsyncadd [#allocation5], 0
      %s381 = sshll.u32 [#allocation9], 4
      %s382 = int_to_ptr.vmem [resolvable:$true] %s381
      %s383 = sshll.u32 %s13, 4
      %s384 = int_to_ptr.hbm [resolvable:$true] %s383
      %386 = dma.vmem_to_hbm [thread:$0]  %s382, 16, %s384, [#allocation5]
    $region69: #{tpu_custom_call.1} parent=1 // pred_fallthru
      _
    // Predicated region
    $region70: #{tpu_custom_call.1} parent=1 // pred_check
      _
    $region71: #{tpu_custom_call.1} parent=1 // pred_check_branch
      %388 = sbr.rel (0) target = $region73
    $region72: #{tpu_custom_call.1} parent=1 // pred_region
      %390 = vsyncadd [#allocation11], 0
      %s392 = sshll.u32 [#allocation10], 4
      %s393 = int_to_ptr.vmem [resolvable:$true] %s392
      %s394 = sshll.u32 %s14, 4
      %s395 = int_to_ptr.hbm [resolvable:$true] %s394
      %397 = dma.vmem_to_hbm [thread:$0]  %s393, 128, %s395, [#allocation11]
    $region73: #{tpu_custom_call.1} parent=1 // pred_fallthru
      _
    // Predicated region
    $region74: #{tpu_custom_call.1} parent=1 // pred_check
      _
    $region75: #{tpu_custom_call.1} parent=1 // pred_check_branch
      %399 = sbr.rel (0) target = $region77
    $region76: #{tpu_custom_call.1} parent=1 // pred_region
      %401 = dma.done [#allocation5], 16
    $region77: #{tpu_custom_call.1} parent=1 // pred_fallthru
      _
    // Predicated region
    $region78: #{tpu_custom_call.1} parent=1 // pred_check
      _
    $region79: #{tpu_custom_call.1} parent=1 // pred_check_branch
      %403 = sbr.rel (0) target = $region81
    $region80: #{tpu_custom_call.1} parent=1 // pred_region
      %405 = dma.done [#allocation11], 128
    $region81: #{tpu_custom_call.1} parent=1 // pred_fallthru
      _
    %406 = vsyncpa [#allocation4], 1
    %407 = vsyncpa [#allocation7], 1
    %408 = vsyncpa [#allocation5], 1
    %409 = vsyncpa [#allocation11], 1

</llo_original>
